<compile_context>
chip_gen: v7x
topology: tpu7x:2x2x1
jax: 0.10.0
libtpu: 0.0.40
codegen_flags: <defaults>
</compile_context>

<pallas_src>
import functools

import jax
import jax.numpy as jnp
from jax import lax
from jax.experimental import pallas as pl
from jax.experimental.pallas import tpu as pltpu


def _round_up(x, m):
    return ((x + m - 1) // m) * m


def _mix_bits_u32(lin_u32, seed_u32):
    """lowbias32-style integer hash -> uniform uint32 bits per element."""
    h = lin_u32 ^ (seed_u32 * jnp.uint32(0x9E3779B9))
    h = h ^ (h >> jnp.uint32(16))
    h = h * jnp.uint32(0x7FEB352D)
    h = h ^ (h >> jnp.uint32(15))
    h = h * jnp.uint32(0x846CA68B)
    h = h ^ (h >> jnp.uint32(16))
    return h


def dropconnect_linear_kernel(seed_ref, x_ref, w_ref, b_ref, o_ref, acc_ref,
                              *, threshold, tn, tk, in_pad):
    k = pl.program_id(2)
    nk = pl.num_programs(2)

    @pl.when(k == 0)
    def _():
        acc_ref[...] = jnp.zeros_like(acc_ref)

    # DropConnect mask: pure function of (seed, global weight coordinates),
    # deliberately independent of the batch grid index -> one mask per forward.
    j = pl.program_id(1)
    row = (lax.broadcasted_iota(jnp.int32, (tn, tk), 0)
           + j * tn).astype(jnp.uint32)
    col = (lax.broadcasted_iota(jnp.int32, (tn, tk), 1)
           + k * tk).astype(jnp.uint32)
    lin = row * jnp.uint32(in_pad) + col
    seed_u = seed_ref[0].astype(jnp.uint32)
    bits = _mix_bits_u32(lin, seed_u)

    # keep iff uniform > p  <=>  bits > floor(p * 2^32)   (prob = 1 - p)
    keep = bits > jnp.uint32(threshold)
    wm = jnp.where(keep, w_ref[...], 0.0)

    # y_tile += x_tile @ W_tile.T, without an explicit transpose: contract the
    # last dim of both operands so W stays in its natural [OUT, IN] layout.
    acc_ref[...] += lax.dot_general(
        x_ref[...], wm,
        dimension_numbers=(((1,), (1,)), ((), ())),
        preferred_element_type=jnp.float32)

    @pl.when(k == nk - 1)
    def _():
        o_ref[...] = (acc_ref[...] + b_ref[...]).astype(o_ref.dtype)


def dropconnect_linear(x, w, b, seed, *, p=0.05):
    """x: [B, IN] f32, w: [OUT, IN] f32, b: [OUT] f32, seed: int scalar."""
    B, IN = x.shape
    OUT, IN2 = w.shape
    assert IN == IN2 and b.shape == (OUT,)

    # Tile sizes: batch is usually tiny -> one batch tile; OUT/IN tiles are
    # lane-dense and MXU friendly, and small enough for v7x VMEM budgets.
    tm = min(_round_up(B, 8), 256)
    tn = min(_round_up(OUT, 128), 512)
    tk = min(_round_up(IN, 128), 512)

    B_pad = _round_up(B, tm)
    OUT_pad = _round_up(OUT, tn)
    IN_pad = _round_up(IN, tk)

    xp = jnp.pad(x, ((0, B_pad - B), (0, IN_pad - IN)))
    wp = jnp.pad(w, ((0, OUT_pad - OUT), (0, IN_pad - IN)))
    bp = jnp.pad(b, (0, OUT_pad - OUT)).reshape(1, OUT_pad)
    seed_arr = jnp.asarray([seed], dtype=jnp.int32)

    threshold = min(int(p * (2 ** 32)), 2 ** 32 - 1)
    kernel = functools.partial(dropconnect_linear_kernel,
                               threshold=threshold, tn=tn, tk=tk, in_pad=IN_pad)

    grid = (B_pad // tm, OUT_pad // tn, IN_pad // tk)
    out = pl.pallas_call(
        kernel,
        out_shape=jax.ShapeDtypeStruct((B_pad, OUT_pad), jnp.float32),
        grid_spec=pltpu.PrefetchScalarGridSpec(
            num_scalar_prefetch=1,                      # seed -> SMEM
            grid=grid,
            in_specs=[
                pl.BlockSpec((tm, tk), lambda i, j, k, s: (i, k)),  # x
                pl.BlockSpec((tn, tk), lambda i, j, k, s: (j, k)),  # W [OUT,IN]
                pl.BlockSpec((1, tn), lambda i, j, k, s: (0, j)),   # bias
            ],
            out_specs=pl.BlockSpec((tm, tn), lambda i, j, k, s: (i, j)),
            scratch_shapes=[pltpu.VMEM((tm, tn), jnp.float32)],
        ),
        compiler_params=pltpu.CompilerParams(
            dimension_semantics=("parallel", "parallel", "arbitrary")),
    )(seed_arr, xp, wp, bp)

    return out[:B, :OUT]


def _reference_mask(seed, OUT, IN, IN_pad, threshold):
    """Same hash as the kernel, computed in plain JAX, for verification."""
    rows = jnp.arange(OUT, dtype=jnp.uint32)[:, None]
    cols = jnp.arange(IN, dtype=jnp.uint32)[None, :]
    lin = rows * jnp.uint32(IN_pad) + cols
    bits = _mix_bits_u32(lin, jnp.uint32(seed))
    return (bits > jnp.uint32(threshold)).astype(jnp.float32)


if __name__ == "__main__":
    # Small, TPU-friendly shapes: batch=8, in_features=128, out_features=64.
    B, IN, OUT = 8, 128, 64
    p = 0.05
    seed = 1234

    key = jax.random.PRNGKey(0)
    kx, kw, kb = jax.random.split(key, 3)
    x = jax.random.normal(kx, (B, IN), dtype=jnp.float32)
    # Deterministic "nn.Linear"-like parameter init.
    bound = 1.0 / (IN ** 0.5)
    w = jax.random.uniform(kw, (OUT, IN), jnp.float32, -bound, bound)
    b = jax.random.uniform(kb, (OUT,), jnp.float32, -bound, bound)

    y = dropconnect_linear(x, w, b, seed, p=p)
    jax.block_until_ready(y)
    assert y.shape == (B, OUT) and y.dtype == jnp.float32

    # Pure-JAX reference using the identical hash-derived mask.
    IN_pad = _round_up(IN, 128)
    threshold = min(int(p * (2 ** 32)), 2 ** 32 - 1)
    mask = _reference_mask(seed, OUT, IN, IN_pad, threshold)
    y_ref = x @ (w * mask).T + b
    jax.block_until_ready(y_ref)
    assert jnp.allclose(y, y_ref, rtol=1e-2, atol=1e-2), "mismatch vs reference"

    print("KERNEL_OK")
</pallas_src>

<mosaic_0001>
module attributes {stable_mosaic.version = 11 : i64} {
  func.func @dropconnect_linear_kernel(%arg0: i32, %arg1: i32, %arg2: i32, %arg3: memref<1xi32, #tpu.memory_space<smem>>, %arg4: memref<8x128xf32, #tpu.memory_space<vmem>>, %arg5: memref<128x128xf32, #tpu.memory_space<vmem>>, %arg6: memref<1x128xf32, #tpu.memory_space<vmem>>, %arg7: memref<8x128xf32, #tpu.memory_space<vmem>>, %arg8: memref<8x128xf32, #tpu.memory_space<vmem>>) attributes {dimension_semantics = [#tpu.dimension_semantics<parallel>, #tpu.dimension_semantics<parallel>, #tpu.dimension_semantics<arbitrary>], iteration_bounds = array<i64: 1, 1, 1>, scalar_prefetch = 1 : i64, scratch_operands = 1 : i64, tpu.core_type = #tpu.core_type<tc>, window_params = [{transform_indices = @transform_0, window_bounds = array<i64: 8, 128>}, {transform_indices = @transform_1, window_bounds = array<i64: 128, 128>}, {transform_indices = @transform_2, window_bounds = array<i64: 1, 128>}, {transform_indices = @transform_3, window_bounds = array<i64: 8, 128>}]} {
    %c0_i32 = arith.constant 0 : i32
    %0 = arith.cmpi eq, %arg2, %c0_i32 : i32
    %1 = arith.extui %0 : i1 to i32
    %c0_i32_0 = arith.constant 0 : i32
    %2 = arith.cmpi ne, %1, %c0_i32_0 : i32
    scf.if %2 {
      %cst_15 = arith.constant 0.000000e+00 : f32
      %44 = vector.broadcast %cst_15 : f32 to vector<8x128xf32>
      %c0_16 = arith.constant 0 : index
      %c0_17 = arith.constant 0 : index
      %45 = vector.load %arg8[%c0_16, %c0_17] : memref<8x128xf32, #tpu.memory_space<vmem>>, vector<8x128xf32>
      tpu.vector_store %arg8[%c0_16, %c0_17], %44 {strides = array<i32>} : memref<8x128xf32, #tpu.memory_space<vmem>>, vector<8x128xf32>,
    } else {
    }
    %3 = tpu.iota {dimensions = array<i32: 0>} : vector<128x128xi32>
    %c128_i32 = arith.constant 128 : i32
    %4 = arith.muli %arg1, %c128_i32 : i32
    %5 = vector.broadcast %4 : i32 to vector<128x128xi32>
    %6 = arith.addi %3, %5 : vector<128x128xi32>
    %7 = tpu.iota {dimensions = array<i32: 1>} : vector<128x128xi32>
    %c128_i32_1 = arith.constant 128 : i32
    %8 = arith.muli %arg2, %c128_i32_1 : i32
    %9 = vector.broadcast %8 : i32 to vector<128x128xi32>
    %10 = arith.addi %7, %9 : vector<128x128xi32>
    %c128_i32_2 = arith.constant 128 : i32
    %11 = vector.broadcast %c128_i32_2 : i32 to vector<128x128xi32>
    %12 = arith.muli %6, %11 : vector<128x128xi32>
    %13 = arith.addi %12, %10 : vector<128x128xi32>
    %c0 = arith.constant 0 : index
    %14 = memref.load %arg3[%c0] : memref<1xi32, #tpu.memory_space<smem>>
    %c-1640531527_i32 = arith.constant -1640531527 : i32
    %15 = arith.muli %14, %c-1640531527_i32 : i32
    %16 = vector.broadcast %15 : i32 to vector<128x128xi32>
    %17 = arith.xori %13, %16 : vector<128x128xi32>
    %c16_i32 = arith.constant 16 : i32
    %18 = vector.broadcast %c16_i32 : i32 to vector<128x128xi32>
    %19 = arith.shrui %17, %18 : vector<128x128xi32>
    %20 = arith.xori %17, %19 : vector<128x128xi32>
    %c2146121005_i32 = arith.constant 2146121005 : i32
    %21 = vector.broadcast %c2146121005_i32 : i32 to vector<128x128xi32>
    %22 = arith.muli %20, %21 : vector<128x128xi32>
    %c15_i32 = arith.constant 15 : i32
    %23 = vector.broadcast %c15_i32 : i32 to vector<128x128xi32>
    %24 = arith.shrui %22, %23 : vector<128x128xi32>
    %25 = arith.xori %22, %24 : vector<128x128xi32>
    %c-2073254261_i32 = arith.constant -2073254261 : i32
    %26 = vector.broadcast %c-2073254261_i32 : i32 to vector<128x128xi32>
    %27 = arith.muli %25, %26 : vector<128x128xi32>
    %c16_i32_3 = arith.constant 16 : i32
    %28 = vector.broadcast %c16_i32_3 : i32 to vector<128x128xi32>
    %29 = arith.shrui %27, %28 : vector<128x128xi32>
    %30 = arith.xori %27, %29 : vector<128x128xi32>
    %c214748364_i32 = arith.constant 214748364 : i32
    %31 = vector.broadcast %c214748364_i32 : i32 to vector<128x128xi32>
    %32 = arith.cmpi ugt, %30, %31 : vector<128x128xi32>
    %c0_4 = arith.constant 0 : index
    %c0_5 = arith.constant 0 : index
    %33 = vector.load %arg5[%c0_4, %c0_5] : memref<128x128xf32, #tpu.memory_space<vmem>>, vector<128x128xf32>
    %cst = arith.constant 0.000000e+00 : f32
    %34 = vector.broadcast %cst : f32 to vector<128x128xf32>
    %35 = arith.select %32, %33, %34 : vector<128x128xi1>, vector<128x128xf32>
    %c0_6 = arith.constant 0 : index
    %c0_7 = arith.constant 0 : index
    %36 = vector.load %arg8[%c0_6, %c0_7] : memref<8x128xf32, #tpu.memory_space<vmem>>, vector<8x128xf32>
    %c0_8 = arith.constant 0 : index
    %c0_9 = arith.constant 0 : index
    %37 = vector.load %arg4[%c0_8, %c0_9] : memref<8x128xf32, #tpu.memory_space<vmem>>, vector<8x128xf32>
    %cst_10 = arith.constant dense<0.000000e+00> : vector<8x128xf32>
    %38 = tpu.matmul %37, %35, %cst_10 {dimension_numbers = #tpu.dot_dimension_numbers<[1], [1], [0], [0], [0, 0, 1, 0], [], []>} : vector<8x128xf32>, vector<128x128xf32>, vector<8x128xf32> -> vector<8x128xf32>
    %39 = arith.addf %36, %38 : vector<8x128xf32>
    %c0_11 = arith.constant 0 : index
    %c0_12 = arith.constant 0 : index
    %40 = vector.load %arg8[%c0_11, %c0_12] : memref<8x128xf32, #tpu.memory_space<vmem>>, vector<8x128xf32>
    tpu.vector_store %arg8[%c0_11, %c0_12], %39 {strides = array<i32>} : memref<8x128xf32, #tpu.memory_space<vmem>>, vector<8x128xf32>,
    %c0_i32_13 = arith.constant 0 : i32
    %41 = arith.cmpi eq, %arg2, %c0_i32_13 : i32
    %42 = arith.extui %41 : i1 to i32
    %c0_i32_14 = arith.constant 0 : i32
    %43 = arith.cmpi ne, %42, %c0_i32_14 : i32
    scf.if %43 {
      %c0_15 = arith.constant 0 : index
      %c0_16 = arith.constant 0 : index
      %44 = vector.load %arg8[%c0_15, %c0_16] : memref<8x128xf32, #tpu.memory_space<vmem>>, vector<8x128xf32>
      %c0_17 = arith.constant 0 : index
      %c0_18 = arith.constant 0 : index
      %45 = vector.load %arg6[%c0_17, %c0_18] : memref<1x128xf32, #tpu.memory_space<vmem>>, vector<1x128xf32>
      %46 = vector.broadcast %45 : vector<1x128xf32> to vector<8x128xf32>
      %47 = arith.addf %44, %46 : vector<8x128xf32>
      %c0_19 = arith.constant 0 : index
      %c0_20 = arith.constant 0 : index
      %48 = vector.load %arg7[%c0_19, %c0_20] : memref<8x128xf32, #tpu.memory_space<vmem>>, vector<8x128xf32>
      tpu.vector_store %arg7[%c0_19, %c0_20], %47 {strides = array<i32>} : memref<8x128xf32, #tpu.memory_space<vmem>>, vector<8x128xf32>,
    } else {
    }
    return
  }
  func.func @transform_0(%arg0: i32, %arg1: i32, %arg2: i32, %arg3: memref<1xi32, #tpu.memory_space<smem>>) -> (i32, i32) {
    %c0_i32 = arith.constant 0 : i32
    return %arg0, %arg2 : i32, i32
  }
  func.func @transform_1(%arg0: i32, %arg1: i32, %arg2: i32, %arg3: memref<1xi32, #tpu.memory_space<smem>>) -> (i32, i32) {
    %c0_i32 = arith.constant 0 : i32
    return %arg1, %arg2 : i32, i32
  }
  func.func @transform_2(%arg0: i32, %arg1: i32, %arg2: i32, %arg3: memref<1xi32, #tpu.memory_space<smem>>) -> (i32, i32) {
    %c0_i32 = arith.constant 0 : i32
    %c0_i32_0 = arith.constant 0 : i32
    return %c0_i32, %arg1 : i32, i32
  }
  func.func @transform_3(%arg0: i32, %arg1: i32, %arg2: i32, %arg3: memref<1xi32, #tpu.memory_space<smem>>) -> (i32, i32) {
    %c0_i32 = arith.constant 0 : i32
    return %arg0, %arg1 : i32, i32
  }
}

</mosaic_0001>

<llo_original>
// kernel: tpu_custom_call.1
$region0: #{tpu_custom_call.1}
  #allocation0 [shape = 'u32[]', space=smem, size = 0x4, offset = 0x4, fixed_abs, tag = 'smem constant byte address 0x4 - core index']
  #allocation1 [shape = 'u32[144,128]{1,0:T(1,128)}', space=vmem, size = 0x12000, scoped, tag = 'internal scratch']
  #allocation2 [shape = 'f32[8,128]{1,0:T(8,128)}', space=vmem, size = 0x1000, scoped, tag = 'scratch operand']
  #allocation3 [shape = 's32[1]{0}', space=sflag, size = 0x4, scoped, tag = 'scoped memory for tpu_custom_call.1']
  #allocation4 [shape = 's32[1]{0:T(128)S(6)}', space=smem, size = 0x200, scoped, tag = 'prefetched SMEM operand 0']
  %s0 = inlined_call_operand.<no memory space> [shape: s32[1], index: 0, kind: input, shape index: {}]
  %s1 = inlined_call_operand.hbm [shape: f32[8,128], index: 1, kind: input, shape index: {}]
  %s2 = inlined_call_operand.hbm [shape: f32[128,128], index: 2, kind: input, shape index: {}]
  %s3 = inlined_call_operand.vmem [shape: f32[1,128], index: 3, kind: input, shape index: {}]
  %s4 = inlined_call_operand.hbm [shape: f32[8,128], index: 4, kind: output, shape index: {}]
  %s5 = sld [smem:[#allocation0]]
  $region38: #{tpu_custom_call.1} parent=0
    _
  %s7 = ssub.s32 1, %s5
  %s8 = scalar_select 0, %s7, %s5
  %9 = sst [smem:[#allocation4]] %s0
  $region1: #{tpu_custom_call.1} parent=0
    #allocation5 [shape = 'u8[4096]{0}', space=vmem, size = 0x1000, scoped, tag = 'input window, operand 1, single buffered']
    #allocation6 [shape = 's32[1]{0}', space=sflag, size = 0x4, scoped, tag = 'scoped memory for tpu_custom_call.1']
    #allocation7 [shape = 's32[1]{0}', space=sflag, size = 0x4, scoped, tag = 'scoped memory for tpu_custom_call.1']
    #allocation8 [shape = 'u8[65536]{0}', space=vmem, size = 0x10000, scoped, tag = 'input window, operand 2, single buffered']
    #allocation9 [shape = 's32[1]{0}', space=sflag, size = 0x4, scoped, tag = 'scoped memory for tpu_custom_call.1']
    #allocation10 [shape = 'u8[4096]{0}', space=vmem, size = 0x1000, scoped, tag = 'output window, operand 0, single buffered']
    %10 = vsyncpa [#allocation6], 0
    %11 = vsyncpa [#allocation9], 0
    %12 = vsyncpa [#allocation7], 0
    // Predicated region
    $region2: #{tpu_custom_call.1} parent=1 // pred_check
      _
    $region3: #{tpu_custom_call.1} parent=1 // pred_check_branch
      %14 = sbr.rel (0) target = $region5
    $region4: #{tpu_custom_call.1} parent=1 // pred_region
      %s16 = ssub.s32 128, 128
      %17 = vsyncadd [#allocation6], %s16
      %s19 = sshll.u32 [#allocation5], 4
      %s20 = int_to_ptr.vmem [resolvable:$true] %s19
      %22 = dma.hbm_to_vmem [thread:$0]  %s1, 128, %s20, [#allocation6]
    $region5: #{tpu_custom_call.1} parent=1 // pred_fallthru
      _
    // Predicated region
    $region6: #{tpu_custom_call.1} parent=1 // pred_check
      _
    $region7: #{tpu_custom_call.1} parent=1 // pred_check_branch
      %24 = sbr.rel (0) target = $region9
    $region8: #{tpu_custom_call.1} parent=1 // pred_region
      %s26 = ssub.s32 2048, 2048
      %27 = vsyncadd [#allocation9], %s26
      %s28 = sshll.u32 [#allocation8], 4
      %s29 = int_to_ptr.vmem [resolvable:$true] %s28
      %34 = dma.hbm_to_vmem [thread:$0]  %s2, 2048, %s29, [#allocation9], 128, 128, 8
    $region9: #{tpu_custom_call.1} parent=1 // pred_fallthru
      _
    // Predicated region
    $region10: #{tpu_custom_call.1} parent=1 // pred_check
      _
    $region11: #{tpu_custom_call.1} parent=1 // pred_check_branch
      %36 = sbr.rel (0) target = $region13
    $region12: #{tpu_custom_call.1} parent=1 // pred_region
      _
    $region13: #{tpu_custom_call.1} parent=1 // pred_fallthru
      _
    // Predicated region
    $region14: #{tpu_custom_call.1} parent=1 // pred_check
      _
    $region15: #{tpu_custom_call.1} parent=1 // pred_check_branch
      %38 = sbr.rel (0) target = $region17
    $region16: #{tpu_custom_call.1} parent=1 // pred_region
      %39 = dma.done [#allocation6], 128
    $region17: #{tpu_custom_call.1} parent=1 // pred_fallthru
      _
    // Predicated region
    $region18: #{tpu_custom_call.1} parent=1 // pred_check
      _
    $region19: #{tpu_custom_call.1} parent=1 // pred_check_branch
      %41 = sbr.rel (0) target = $region21
    $region20: #{tpu_custom_call.1} parent=1 // pred_region
      %42 = dma.done [#allocation9], 2048
    $region21: #{tpu_custom_call.1} parent=1 // pred_fallthru
      _
    %p43 = scmp.eq.s32.totalorder 0, 0
    // Predicated region
    $region22: #{tpu_custom_call.1} parent=1 // pred_check
      %p44 = pneg %p43
    $region23: #{tpu_custom_call.1} parent=1 // pred_check_branch
      %46 = sbr.rel (%p44) target = $region25
    $region24: #{tpu_custom_call.1} parent=1 // pred_region
      %47 = vst [vmem:[#allocation2] sm:$0xff] 0.0
    $region25: #{tpu_custom_call.1} parent=1 // pred_fallthru
      _
    %v48 = vlaneseq
    %v49 = vshrl.u32 %v48, 7
    %v50 = vadd.s32 %v49, 8
    %v51 = vadd.s32 %v49, 16
    %v52 = vadd.s32 %v49, 24
    %v53 = vadd.s32 %v49, 32
    %v54 = vadd.s32 %v49, 40
    %v55 = vadd.s32 %v49, 48
    %v56 = vadd.s32 %v49, 56
    %v57 = vadd.s32 %v49, 64
    %v58 = vadd.s32 %v49, 72
    %v59 = vadd.s32 %v49, 80
    %v60 = vadd.s32 %v49, 88
    %v61 = vadd.s32 %v49, 96
    %v62 = vadd.s32 %v49, 104
    %v63 = vadd.s32 %v49, 112
    %v64 = vadd.s32 %v49, 120
    %s65 = smul.u32 0, 128
    %v66 = vstv %s65
    %v67 = vadd.s32 %v49, %v66
    %v68 = vadd.s32 %v50, %v66
    %v69 = vadd.s32 %v51, %v66
    %v70 = vadd.s32 %v52, %v66
    %v71 = vadd.s32 %v53, %v66
    %v72 = vadd.s32 %v54, %v66
    %v73 = vadd.s32 %v55, %v66
    %v74 = vadd.s32 %v56, %v66
    %v75 = vadd.s32 %v57, %v66
    %v76 = vadd.s32 %v58, %v66
    %v77 = vadd.s32 %v59, %v66
    %v78 = vadd.s32 %v60, %v66
    %v79 = vadd.s32 %v61, %v66
    %v80 = vadd.s32 %v62, %v66
    %v81 = vadd.s32 %v63, %v66
    %v82 = vadd.s32 %v64, %v66
    %v83 = vlaneseq
    %v84 = vand.u32 %v83, 127
    %s85 = smul.u32 0, 128
    %v86 = vstv %s85
    %v87 = vadd.s32 %v84, %v86
    %v88 = vmul.u32 %v67, 128
    %v89 = vmul.u32 %v68, 128
    %v90 = vmul.u32 %v69, 128
    %v91 = vmul.u32 %v70, 128
    %v92 = vmul.u32 %v71, 128
    %v93 = vmul.u32 %v72, 128
    %v94 = vmul.u32 %v73, 128
    %v95 = vmul.u32 %v74, 128
    %v96 = vmul.u32 %v75, 128
    %v97 = vmul.u32 %v76, 128
    %v98 = vmul.u32 %v77, 128
    %v99 = vmul.u32 %v78, 128
    %v100 = vmul.u32 %v79, 128
    %v101 = vmul.u32 %v80, 128
    %v102 = vmul.u32 %v81, 128
    %v103 = vmul.u32 %v82, 128
    %v104 = vadd.s32 %v88, %v87
    %v105 = vadd.s32 %v89, %v87
    %v106 = vadd.s32 %v90, %v87
    %v107 = vadd.s32 %v91, %v87
    %v108 = vadd.s32 %v92, %v87
    %v109 = vadd.s32 %v93, %v87
    %v110 = vadd.s32 %v94, %v87
    %v111 = vadd.s32 %v95, %v87
    %v112 = vadd.s32 %v96, %v87
    %v113 = vadd.s32 %v97, %v87
    %v114 = vadd.s32 %v98, %v87
    %v115 = vadd.s32 %v99, %v87
    %v116 = vadd.s32 %v100, %v87
    %v117 = vadd.s32 %v101, %v87
    %v118 = vadd.s32 %v102, %v87
    %v119 = vadd.s32 %v103, %v87
    %s120 = sld [smem:[#allocation4]]
    %s121 = smul.u32 %s120, 2654435769
    %v122 = vstv %s121
    %v123 = vxor.u32 %v104, %v122
    %v124 = vxor.u32 %v105, %v122
    %v125 = vxor.u32 %v106, %v122
    %v126 = vxor.u32 %v107, %v122
    %v127 = vxor.u32 %v108, %v122
    %v128 = vxor.u32 %v109, %v122
    %v129 = vxor.u32 %v110, %v122
    %v130 = vxor.u32 %v111, %v122
    %v131 = vxor.u32 %v112, %v122
    %v132 = vxor.u32 %v113, %v122
    %v133 = vxor.u32 %v114, %v122
    %v134 = vxor.u32 %v115, %v122
    %v135 = vxor.u32 %v116, %v122
    %v136 = vxor.u32 %v117, %v122
    %v137 = vxor.u32 %v118, %v122
    %v138 = vxor.u32 %v119, %v122
    %v139 = vshrl.u32 %v123, 16
    %v140 = vshrl.u32 %v124, 16
    %v141 = vshrl.u32 %v125, 16
    %v142 = vshrl.u32 %v126, 16
    %v143 = vshrl.u32 %v127, 16
    %v144 = vshrl.u32 %v128, 16
    %v145 = vshrl.u32 %v129, 16
    %v146 = vshrl.u32 %v130, 16
    %v147 = vshrl.u32 %v131, 16
    %v148 = vshrl.u32 %v132, 16
    %v149 = vshrl.u32 %v133, 16
    %v150 = vshrl.u32 %v134, 16
    %v151 = vshrl.u32 %v135, 16
    %v152 = vshrl.u32 %v136, 16
    %v153 = vshrl.u32 %v137, 16
    %v154 = vshrl.u32 %v138, 16
    %v155 = vxor.u32 %v123, %v139
    %v156 = vxor.u32 %v124, %v140
    %v157 = vxor.u32 %v125, %v141
    %v158 = vxor.u32 %v126, %v142
    %v159 = vxor.u32 %v127, %v143
    %v160 = vxor.u32 %v128, %v144
    %v161 = vxor.u32 %v129, %v145
    %v162 = vxor.u32 %v130, %v146
    %v163 = vxor.u32 %v131, %v147
    %v164 = vxor.u32 %v132, %v148
    %v165 = vxor.u32 %v133, %v149
    %v166 = vxor.u32 %v134, %v150
    %v167 = vxor.u32 %v135, %v151
    %v168 = vxor.u32 %v136, %v152
    %v169 = vxor.u32 %v137, %v153
    %v170 = vxor.u32 %v138, %v154
    %v171 = vmul.u32 %v155, 2146121005
    %v172 = vmul.u32 %v156, 2146121005
    %v173 = vmul.u32 %v157, 2146121005
    %v174 = vmul.u32 %v158, 2146121005
    %v175 = vmul.u32 %v159, 2146121005
    %v176 = vmul.u32 %v160, 2146121005
    %v177 = vmul.u32 %v161, 2146121005
    %v178 = vmul.u32 %v162, 2146121005
    %v179 = vmul.u32 %v163, 2146121005
    %v180 = vmul.u32 %v164, 2146121005
    %v181 = vmul.u32 %v165, 2146121005
    %v182 = vmul.u32 %v166, 2146121005
    %v183 = vmul.u32 %v167, 2146121005
    %v184 = vmul.u32 %v168, 2146121005
    %v185 = vmul.u32 %v169, 2146121005
    %v186 = vmul.u32 %v170, 2146121005
    %v187 = vshrl.u32 %v171, 15
    %v188 = vshrl.u32 %v172, 15
    %v189 = vshrl.u32 %v173, 15
    %v190 = vshrl.u32 %v174, 15
    %v191 = vshrl.u32 %v175, 15
    %v192 = vshrl.u32 %v176, 15
    %v193 = vshrl.u32 %v177, 15
    %v194 = vshrl.u32 %v178, 15
    %v195 = vshrl.u32 %v179, 15
    %v196 = vshrl.u32 %v180, 15
    %v197 = vshrl.u32 %v181, 15
    %v198 = vshrl.u32 %v182, 15
    %v199 = vshrl.u32 %v183, 15
    %v200 = vshrl.u32 %v184, 15
    %v201 = vshrl.u32 %v185, 15
    %v202 = vshrl.u32 %v186, 15
    %v203 = vxor.u32 %v171, %v187
    %v204 = vxor.u32 %v172, %v188
    %v205 = vxor.u32 %v173, %v189
    %v206 = vxor.u32 %v174, %v190
    %v207 = vxor.u32 %v175, %v191
    %v208 = vxor.u32 %v176, %v192
    %v209 = vxor.u32 %v177, %v193
    %v210 = vxor.u32 %v178, %v194
    %v211 = vxor.u32 %v179, %v195
    %v212 = vxor.u32 %v180, %v196
    %v213 = vxor.u32 %v181, %v197
    %v214 = vxor.u32 %v182, %v198
    %v215 = vxor.u32 %v183, %v199
    %v216 = vxor.u32 %v184, %v200
    %v217 = vxor.u32 %v185, %v201
    %v218 = vxor.u32 %v186, %v202
    %v219 = vmul.u32 %v203, 2221713035
    %v220 = vmul.u32 %v204, 2221713035
    %v221 = vmul.u32 %v205, 2221713035
    %v222 = vmul.u32 %v206, 2221713035
    %v223 = vmul.u32 %v207, 2221713035
    %v224 = vmul.u32 %v208, 2221713035
    %v225 = vmul.u32 %v209, 2221713035
    %v226 = vmul.u32 %v210, 2221713035
    %v227 = vmul.u32 %v211, 2221713035
    %v228 = vmul.u32 %v212, 2221713035
    %v229 = vmul.u32 %v213, 2221713035
    %v230 = vmul.u32 %v214, 2221713035
    %v231 = vmul.u32 %v215, 2221713035
    %v232 = vmul.u32 %v216, 2221713035
    %v233 = vmul.u32 %v217, 2221713035
    %v234 = vmul.u32 %v218, 2221713035
    %v235 = vshrl.u32 %v219, 16
    %v236 = vshrl.u32 %v220, 16
    %v237 = vshrl.u32 %v221, 16
    %v238 = vshrl.u32 %v222, 16
    %v239 = vshrl.u32 %v223, 16
    %v240 = vshrl.u32 %v224, 16
    %v241 = vshrl.u32 %v225, 16
    %v242 = vshrl.u32 %v226, 16
    %v243 = vshrl.u32 %v227, 16
    %v244 = vshrl.u32 %v228, 16
    %v245 = vshrl.u32 %v229, 16
    %v246 = vshrl.u32 %v230, 16
    %v247 = vshrl.u32 %v231, 16
    %v248 = vshrl.u32 %v232, 16
    %v249 = vshrl.u32 %v233, 16
    %v250 = vshrl.u32 %v234, 16
    %v251 = vxor.u32 %v219, %v235
    %v252 = vxor.u32 %v220, %v236
    %v253 = vxor.u32 %v221, %v237
    %v254 = vxor.u32 %v222, %v238
    %v255 = vxor.u32 %v223, %v239
    %v256 = vxor.u32 %v224, %v240
    %v257 = vxor.u32 %v225, %v241
    %v258 = vxor.u32 %v226, %v242
    %v259 = vxor.u32 %v227, %v243
    %v260 = vxor.u32 %v228, %v244
    %v261 = vxor.u32 %v229, %v245
    %v262 = vxor.u32 %v230, %v246
    %v263 = vxor.u32 %v231, %v247
    %v264 = vxor.u32 %v232, %v248
    %v265 = vxor.u32 %v233, %v249
    %v266 = vxor.u32 %v234, %v250
    %vm267 = vcmp.gt.u32.totalorder %v251, 214748364
    %vm268 = vcmp.gt.u32.totalorder %v252, 214748364
    %vm269 = vcmp.gt.u32.totalorder %v253, 214748364
    %vm270 = vcmp.gt.u32.totalorder %v254, 214748364
    %vm271 = vcmp.gt.u32.totalorder %v255, 214748364
    %vm272 = vcmp.gt.u32.totalorder %v256, 214748364
    %vm273 = vcmp.gt.u32.totalorder %v257, 214748364
    %vm274 = vcmp.gt.u32.totalorder %v258, 214748364
    %vm275 = vcmp.gt.u32.totalorder %v259, 214748364
    %vm276 = vcmp.gt.u32.totalorder %v260, 214748364
    %vm277 = vcmp.gt.u32.totalorder %v261, 214748364
    %vm278 = vcmp.gt.u32.totalorder %v262, 214748364
    %vm279 = vcmp.gt.u32.totalorder %v263, 214748364
    %vm280 = vcmp.gt.u32.totalorder %v264, 214748364
    %vm281 = vcmp.gt.u32.totalorder %v265, 214748364
    %vm282 = vcmp.gt.u32.totalorder %v266, 214748364
    %v283 = vld [vmem:[#allocation8] sm:$0xff]
    %v284 = vld [vmem:[#allocation8 + $0x8] sm:$0xff]
    %v285 = vld [vmem:[#allocation8 + $0x10] sm:$0xff]
    %v286 = vld [vmem:[#allocation8 + $0x18] sm:$0xff]
    %v287 = vld [vmem:[#allocation8 + $0x20] sm:$0xff]
    %v288 = vld [vmem:[#allocation8 + $0x28] sm:$0xff]
    %v289 = vld [vmem:[#allocation8 + $0x30] sm:$0xff]
    %v290 = vld [vmem:[#allocation8 + $0x38] sm:$0xff]
    %v291 = vld [vmem:[#allocation8 + $0x40] sm:$0xff]
    %v292 = vld [vmem:[#allocation8 + $0x48] sm:$0xff]
    %v293 = vld [vmem:[#allocation8 + $0x50] sm:$0xff]
    %v294 = vld [vmem:[#allocation8 + $0x58] sm:$0xff]
    %v295 = vld [vmem:[#allocation8 + $0x60] sm:$0xff]
    %v296 = vld [vmem:[#allocation8 + $0x68] sm:$0xff]
    %v297 = vld [vmem:[#allocation8 + $0x70] sm:$0xff]
    %v298 = vld [vmem:[#allocation8 + $0x78] sm:$0xff]
    %v299 = vsel %vm267, %v283, 0.0
    %v300 = vsel %vm268, %v284, 0.0
    %v301 = vsel %vm269, %v285, 0.0
    %v302 = vsel %vm270, %v286, 0.0
    %v303 = vsel %vm271, %v287, 0.0
    %v304 = vsel %vm272, %v288, 0.0
    %v305 = vsel %vm273, %v289, 0.0
    %v306 = vsel %vm274, %v290, 0.0
    %v307 = vsel %vm275, %v291, 0.0
    %v308 = vsel %vm276, %v292, 0.0
    %v309 = vsel %vm277, %v293, 0.0
    %v310 = vsel %vm278, %v294, 0.0
    %v311 = vsel %vm279, %v295, 0.0
    %v312 = vsel %vm280, %v296, 0.0
    %v313 = vsel %vm281, %v297, 0.0
    %v314 = vsel %vm282, %v298, 0.0
    %v315 = vld [vmem:[#allocation2] sm:$0xff]
    %v316 = vld [vmem:[#allocation5] sm:$0xff]
    %317 = vmatprep.subr.mxu0 0.0
    %318 = vmatpush1.xpose.msra.mxu0 %v299
    %319 = vmatprep.subr.mxu0 0.0
    %320 = vmatpush1.xpose.msra.mxu0 %v300
    %321 = vmatprep.subr.mxu0 0.0
    %322 = vmatpush1.xpose.msra.mxu0 %v301
    %323 = vmatprep.subr.mxu0 0.0
    %324 = vmatpush1.xpose.msra.mxu0 %v302
    %325 = vmatprep.subr.mxu0 0.0
    %326 = vmatpush1.xpose.msra.mxu0 %v303
    %327 = vmatprep.subr.mxu0 0.0
    %328 = vmatpush1.xpose.msra.mxu0 %v304
    %329 = vmatprep.subr.mxu0 0.0
    %330 = vmatpush1.xpose.msra.mxu0 %v305
    %331 = vmatprep.subr.mxu0 0.0
    %332 = vmatpush1.xpose.msra.mxu0 %v306
    %333 = vmatprep.subr.mxu0 0.0
    %334 = vmatpush1.xpose.msra.mxu0 %v307
    %335 = vmatprep.subr.mxu0 0.0
    %336 = vmatpush1.xpose.msra.mxu0 %v308
    %337 = vmatprep.subr.mxu0 0.0
    %338 = vmatpush1.xpose.msra.mxu0 %v309
    %339 = vmatprep.subr.mxu0 0.0
    %340 = vmatpush1.xpose.msra.mxu0 %v310
    %341 = vmatprep.subr.mxu0 0.0
    %342 = vmatpush1.xpose.msra.mxu0 %v311
    %343 = vmatprep.subr.mxu0 0.0
    %344 = vmatpush1.xpose.msra.mxu0 %v312
    %345 = vmatprep.subr.mxu0 0.0
    %346 = vmatpush1.xpose.msra.mxu0 %v313
    %347 = vmatprep.subr.mxu0 0.0
    %348 = vmatpush1.xpose.msra.mxu0 %v314
    %349 = vmatprep.subr.mxu0 0.0
    %350 = vmatpush1.xpose.msra.mxu0 0.0
    %351 = vmatprep.subr.mxu0 0.0
    %352 = vmatpush1.xpose.msra.mxu0 0.0
    %353 = vmatprep.subr.mxu0 0.0
    %354 = vmatpush1.xpose.msra.mxu0 0.0
    %355 = vmatprep.subr.mxu0 0.0
    %356 = vmatpush1.xpose.msra.mxu0 0.0
    %357 = vmatprep.subr.mxu0 0.0
    %358 = vmatpush1.xpose.msra.mxu0 0.0
    %359 = vmatprep.subr.mxu0 0.0
    %360 = vmatpush1.xpose.msra.mxu0 0.0
    %361 = vmatprep.subr.mxu0 0.0
    %362 = vmatpush1.xpose.msra.mxu0 0.0
    %363 = vmatprep.subr.mxu0 0.0
    %364 = vmatpush1.xpose.msra.mxu0 0.0
    %365 = vmatprep.subr.mxu0 0.0
    %366 = vmatpush1.xpose.msra.mxu0 0.0
    %367 = vmatprep.subr.mxu0 0.0
    %368 = vmatpush1.xpose.msra.mxu0 0.0
    %369 = vmatprep.subr.mxu0 0.0
    %370 = vmatpush1.xpose.msra.mxu0 0.0
    %371 = vmatprep.subr.mxu0 0.0
    %372 = vmatpush1.xpose.msra.mxu0 0.0
    %373 = vmatprep.subr.mxu0 0.0
    %374 = vmatpush1.xpose.msra.mxu0 0.0
    %375 = vmatprep.subr.mxu0 0.0
    %376 = vmatpush1.xpose.msra.mxu0 0.0
    %377 = vmatprep.subr.mxu0 0.0
    %378 = vmatpush1.xpose.msra.mxu0 0.0
    %379 = vmatprep.subr.mxu0 0.0
    %380 = vmatpush1.xpose.msra.mxu0 0.0
    %381 = vmatprep.mubr.f32.mxu0 0.0
    %382 = vmatmul.mubr.f32.gmra.mrb[0].mxu0 %v316
    %v383 = vpop.f32.mrb[0].mxu0
    %v384 = vadd.f32 0.0, %v383
    %v385 = vpop.f32.mrb[0].mxu0
    %386 = vdwg.mxu0
    %v387 = vadd.f32 %v315, %v384
    %388 = vst [vmem:[#allocation2] sm:$0xff] %v387
    // Predicated region
    $region26: #{tpu_custom_call.1} parent=1 // pred_check
      %p389 = pneg %p43
    $region27: #{tpu_custom_call.1} parent=1 // pred_check_branch
      %391 = sbr.rel (%p389) target = $region29
    $region28: #{tpu_custom_call.1} parent=1 // pred_region
      %v392 = vld [vmem:[#allocation2] sm:$0xff]
      %v393 = vld [vmem:[%s3] sm:$0x1]
      %v395 = vlaneseq
      %v396 = vshrl.u32 %v395, 7
      %v397 = vsub.s32 0, %v396
      %v398 = vrot.slane %v393, %v397
      %v400 = vadd.f32 %v392, %v398
      %401 = vst [vmem:[#allocation10] sm:$0xff] %v400
    $region29: #{tpu_custom_call.1} parent=1 // pred_fallthru
      _
    // Predicated region
    $region30: #{tpu_custom_call.1} parent=1 // pred_check
      _
    $region31: #{tpu_custom_call.1} parent=1 // pred_check_branch
      %403 = sbr.rel (0) target = $region33
    $region32: #{tpu_custom_call.1} parent=1 // pred_region
      %s405 = ssub.s32 128, 128
      %406 = vsyncadd [#allocation7], %s405
      %s408 = sshll.u32 [#allocation10], 4
      %s409 = int_to_ptr.vmem [resolvable:$true] %s408
      %411 = dma.vmem_to_hbm [thread:$0]  %s409, 128, %s4, [#allocation7]
    $region33: #{tpu_custom_call.1} parent=1 // pred_fallthru
      _
    // Predicated region
    $region34: #{tpu_custom_call.1} parent=1 // pred_check
      _
    $region35: #{tpu_custom_call.1} parent=1 // pred_check_branch
      %413 = sbr.rel (0) target = $region37
    $region36: #{tpu_custom_call.1} parent=1 // pred_region
      %414 = dma.done [#allocation7], 128
    $region37: #{tpu_custom_call.1} parent=1 // pred_fallthru
      _
    %415 = vsyncpa [#allocation6], 1
    %416 = vsyncpa [#allocation9], 1
    %417 = vsyncpa [#allocation7], 1

</llo_original>
